<compile_context>
chip_gen: v5e
topology: v5e:2x2
jax: 0.10.0
libtpu: 0.0.40
codegen_flags: <defaults>
</compile_context>

<pallas_src>
import functools

import numpy as np
import jax
import jax.numpy as jnp
from jax.experimental import pallas as pl
from jax.experimental.pallas import tpu as pltpu


_LANE = 128          # TPU lane width
_SUBLANE = 8         # f32 sublane tile
_TARGET_LANES = 512  # target packed lane width per grid step (v6e sweet spot)


def _round_up(x, m):
    return -(-x // m) * m


# -----------------------------------------------------------------------------
# Pallas kernel: shear + gate probability + log-step cumprod (fwd & bwd)
# -----------------------------------------------------------------------------
def _gate_kernel(pack_ref, fwd_ref, bwd_ref, *, n_slot, resolution, hard):
    """One grid step = one group of lane-packed documents.

    pack_ref : (1, 8, W) f32 block
        sublane 0 = forward inner scores   (docs packed at stride n_slot)
        sublane 1 = backward (reversed) inner scores
        sublane 2 = within-doc lane index, as f32
    fwd_ref / bwd_ref : (rows_pad, W) f32, cumprod along the sublane axis.
    """
    rows, width = fwd_ref.shape
    pack = pack_ref[...]                                    # (1, 8, W)
    s_fwd = pack[:, 0, :]                                   # (1, W)
    s_bwd = pack[:, 1, :]                                   # (1, W)
    lane_pos = jnp.broadcast_to(pack[:, 2, :], (rows, width))

    row_i = jax.lax.broadcasted_iota(jnp.int32, (rows, width), 0)
    shift_i = row_i + 1                                     # row k holds scores shifted by k+1
    keep = lane_pos >= shift_i.astype(jnp.float32)          # False -> torch zero-pad region

    # Per-bit masks for composing a per-row lane roll of (k+1) out of
    # log2(rows) full-block rolls (XLU slot) + selects (VPU slot).
    bit_steps = []
    b = 1
    while b <= rows:
        amt = b % width
        if amt:
            bit_steps.append((amt, (shift_i & b) != 0))
        b <<= 1

    def gate(score_row):
        s = jnp.broadcast_to(score_row, (rows, width))      # (rows, W)
        hat = s
        for amt, use in bit_steps:                          # row k ends rolled by k+1
            hat = jnp.where(use, pltpu.roll(hat, shift=amt, axis=1), hat)
        hat = jnp.where(keep, hat, 0.0)                     # zero fill (torch pad_score)
        x = hat - s
        if hard:
            # (hardtanh(x/res * 2 + 1) + 1) / 2, scale folded at trace time
            return (jnp.clip(x * (2.0 / resolution) + 1.0, -1.0, 1.0) + 1.0) * 0.5
        # sigmoid(x/res * 10 + 5), scale folded at trace time
        return jax.nn.sigmoid(x * (10.0 / resolution) + 5.0)

    g_fwd = gate(s_fwd)
    g_bwd = gate(s_bwd)

    # Hillis-Steele inclusive cumprod along the sublane (shift) axis:
    # log2(rows) sublane rolls + masked multiplies instead of a serial row loop.
    off = 1
    while off < rows:
        valid = row_i >= off
        g_fwd = jnp.where(valid, g_fwd * pltpu.roll(g_fwd, shift=off, axis=0), g_fwd)
        g_bwd = jnp.where(valid, g_bwd * pltpu.roll(g_bwd, shift=off, axis=0), g_bwd)
        off <<= 1

    fwd_ref[...] = g_fwd                                    # one unmasked full-block store
    bwd_ref[...] = g_bwd


# -----------------------------------------------------------------------------
# Batched (all docs in one pallas_call) packed gate computation
# -----------------------------------------------------------------------------
@functools.partial(jax.jit,
                   static_argnames=("rows_pad", "n_slot", "resolution", "hard"))
def _gate_packed(score, idx_fwd, idx_bwd, *, rows_pad, n_slot, resolution, hard):
    num_groups, width = idx_fwd.shape
    score_f32 = score.astype(jnp.float32)
    s_fwd = jnp.take(score_f32, idx_fwd, axis=0)            # (G, W) single gather
    s_bwd = jnp.take(score_f32, idx_bwd, axis=0)            # (G, W)

    # within-doc lane index (trace-time constant), carried as f32 in sublane 2
    lane_pos = jnp.asarray(np.arange(width) % n_slot, dtype=jnp.float32)
    lane_pos = jnp.broadcast_to(lane_pos[None, None, :], (num_groups, 1, width))
    pack = jnp.concatenate(
        [s_fwd[:, None, :], s_bwd[:, None, :], lane_pos,
         jnp.zeros((num_groups, 5, width), jnp.float32)], axis=1)   # (G, 8, W)

    kernel = functools.partial(_gate_kernel, n_slot=n_slot,
                               resolution=resolution, hard=hard)
    out_sds = jax.ShapeDtypeStruct((num_groups * rows_pad, width), jnp.float32)
    return pl.pallas_call(
        kernel,
        grid=(num_groups,),
        in_specs=[pl.BlockSpec((1, 8, width), lambda g: (g, 0, 0))],
        out_specs=(pl.BlockSpec((rows_pad, width), lambda g: (g, 0)),
                   pl.BlockSpec((rows_pad, width), lambda g: (g, 0))),
        out_shape=(out_sds, out_sds),
        compiler_params=pltpu.CompilerParams(
            dimension_semantics=("parallel",)),   # doc-group axis -> 2nd TC on v7x
    )(pack)


# -----------------------------------------------------------------------------
# Gate_Net wrapper (matches the PyTorch forward() semantics)
# -----------------------------------------------------------------------------
class GateNet:
    def __init__(self, dim_in, dropout, resolution, hard):
        self.dim = dim_in
        self.dropout = dropout      # nn.Dropout never applied in forward(); no-op
        self.resolution = float(resolution)
        self.hard = bool(hard)

    def forward(self, score, rep_srcs, rep_idx, score_idx):
        # rep_srcs / rep_idx are unused by the reference forward pass.
        del rep_srcs, rep_idx
        num_docs = len(score_idx)
        if num_docs == 0:
            return []
        doc_lens = [len(ix) for ix in score_idx]
        if min(doc_lens) < 4:
            # torch's pad_score/stack needs >= 2 inner scores per document
            raise ValueError("Gate_Net: every document needs >= 4 scores")
        inner_lens = [L - 2 for L in doc_lens]              # len(score[1:-1]) per doc

        # ---- static packing plan (pure python/numpy, no tracing) -----------
        n_slot = max(inner_lens)                            # lanes per doc slot
        rows_pad = max(_SUBLANE, _round_up(n_slot - 1, _SUBLANE))
        docs_per_group = max(1, min(num_docs, _TARGET_LANES // n_slot))
        width = _round_up(docs_per_group * n_slot, _LANE)   # lane-dense block width
        num_groups = -(-num_docs // docs_per_group)

        idx_fwd = np.zeros((num_groups, width), dtype=np.int32)
        idx_bwd = np.zeros((num_groups, width), dtype=np.int32)
        for d, ix in enumerate(score_idx):
            g, slot = divmod(d, docs_per_group)
            inner = np.asarray(ix[1:-1], dtype=np.int32)    # drop first/last score
            c0 = slot * n_slot
            idx_fwd[g, c0:c0 + inner.size] = inner
            idx_bwd[g, c0:c0 + inner.size] = inner[::-1]    # torch.flip

        fwd_all, bwd_all = _gate_packed(
            jnp.asarray(score), jnp.asarray(idx_fwd), jnp.asarray(idx_bwd),
            rows_pad=rows_pad, n_slot=n_slot,
            resolution=self.resolution, hard=self.hard)

        # ---- unpack per document (static slices) ---------------------------
        out_dtype = jnp.asarray(score).dtype
        gate_list = []
        for d, n in enumerate(inner_lens):
            g, slot = divmod(d, docs_per_group)
            r0 = g * rows_pad
            c0 = slot * n_slot
            fwd = fwd_all[r0:r0 + n - 1, c0:c0 + n].astype(out_dtype)
            bwd = bwd_all[r0:r0 + n - 1, c0:c0 + n].astype(out_dtype)
            gate_list.append((fwd, bwd))
        return gate_list
        # TODO(synk): cpt_gate() is dead code w.r.t. forward() and is not ported.


# -----------------------------------------------------------------------------
# Pure-numpy reference (mirrors the PyTorch math) for a sanity check
# -----------------------------------------------------------------------------
def _ref_gate(score_doc, resolution, hard):
    s = np.asarray(score_doc, dtype=np.float32)[1:-1]
    n = s.shape[0]

    def pad_hat(v):
        pad = np.concatenate([np.zeros(n, np.float32), v])
        return np.stack([pad[i:i + n] for i in range(n - 1, 0, -1)], axis=0)

    def prob(hat, v):
        x = (hat - v[None, :]) / resolution
        if hard:
            return (np.clip(x * 2.0 + 1.0, -1.0, 1.0) + 1.0) / 2.0
        return 1.0 / (1.0 + np.exp(-(x * 10.0 + 5.0)))

    fwd = np.cumprod(prob(pad_hat(s), s), axis=0)
    vb = s[::-1]
    bwd = np.cumprod(prob(pad_hat(vb), vb), axis=0)
    return fwd, bwd


if __name__ == "__main__":
    key = jax.random.PRNGKey(0)

    dim_in = 32
    dropout = 0.1
    resolution = 0.5

    # small synthetic input: 16 scores; two docs of different length (8 and 6)
    num_scores = 16
    score = jax.random.normal(key, (num_scores,), dtype=jnp.float32)
    score_idx = [list(range(0, 8)), list(range(8, 14))]
    rep_srcs = []   # unused by forward()
    rep_idx = []    # unused by forward()

    score_np = np.asarray(score)
    ok = True
    for hard in (False, True):   # exercise both soft (sigmoid) and hard paths
        net = GateNet(dim_in, dropout, resolution, hard)
        gates = net.forward(score, rep_srcs, rep_idx, score_idx)
        gates = jax.block_until_ready(gates)
        for (fwd, bwd), idx_list in zip(gates, score_idx):
            rf, rb = _ref_gate(score_np[np.array(idx_list)], resolution, hard)
            ok &= (tuple(fwd.shape) == rf.shape) and (tuple(bwd.shape) == rb.shape)
            ok &= bool(np.allclose(np.asarray(fwd), rf, atol=1e-5))
            ok &= bool(np.allclose(np.asarray(bwd), rb, atol=1e-5))

    assert ok, "Pallas Gate_Net output mismatch vs reference"
    print("KERNEL_OK")
</pallas_src>

<mosaic_0001>
module attributes {stable_mosaic.version = 11 : i64} {
  func.func @_gate_kernel(%arg0: i32, %arg1: memref<1x8x128xf32, #tpu.memory_space<vmem>>, %arg2: memref<8x128xf32, #tpu.memory_space<vmem>>, %arg3: memref<8x128xf32, #tpu.memory_space<vmem>>) attributes {dimension_semantics = [#tpu.dimension_semantics<parallel>], iteration_bounds = array<i64: 1>, scalar_prefetch = 0 : i64, scratch_operands = 0 : i64, tpu.core_type = #tpu.core_type<tc>, window_params = [{transform_indices = @transform_0, window_bounds = array<i64: 1, 8, 128>}, {transform_indices = @transform_1, window_bounds = array<i64: 8, 128>}, {transform_indices = @transform_2, window_bounds = array<i64: 8, 128>}]} {
    %c0 = arith.constant 0 : index
    %c0_0 = arith.constant 0 : index
    %c0_1 = arith.constant 0 : index
    %0 = vector.load %arg1[%c0, %c0_0, %c0_1] : memref<1x8x128xf32, #tpu.memory_space<vmem>>, vector<1x8x128xf32>
    %1 = vector.extract_strided_slice %0 {offsets = [0, 0, 0], sizes = [1, 1, 128], strides = [1, 1, 1]} : vector<1x8x128xf32> to vector<1x1x128xf32>
    %2 = vector.shape_cast %1 : vector<1x1x128xf32> to vector<1x128xf32>
    %3 = vector.extract_strided_slice %0 {offsets = [0, 1, 0], sizes = [1, 1, 128], strides = [1, 1, 1]} : vector<1x8x128xf32> to vector<1x1x128xf32>
    %4 = vector.shape_cast %3 : vector<1x1x128xf32> to vector<1x128xf32>
    %5 = vector.extract_strided_slice %0 {offsets = [0, 2, 0], sizes = [1, 1, 128], strides = [1, 1, 1]} : vector<1x8x128xf32> to vector<1x1x128xf32>
    %6 = vector.shape_cast %5 : vector<1x1x128xf32> to vector<1x128xf32>
    %7 = vector.shape_cast %6 : vector<1x128xf32> to vector<1x128xf32>
    %8 = vector.broadcast %7 : vector<1x128xf32> to vector<8x128xf32>
    %9 = tpu.iota {dimensions = array<i32: 0>} : vector<8x128xi32>
    %c1_i32 = arith.constant 1 : i32
    %10 = vector.broadcast %c1_i32 : i32 to vector<8x128xi32>
    %11 = arith.addi %9, %10 : vector<8x128xi32>
    %12 = arith.sitofp %11 : vector<8x128xi32> to vector<8x128xf32>
    %13 = arith.cmpf oge, %8, %12 : vector<8x128xf32>
    %c1_i32_2 = arith.constant 1 : i32
    %14 = vector.broadcast %c1_i32_2 : i32 to vector<8x128xi32>
    %15 = arith.andi %11, %14 : vector<8x128xi32>
    %c0_i32 = arith.constant 0 : i32
    %16 = vector.broadcast %c0_i32 : i32 to vector<8x128xi32>
    %17 = arith.cmpi ne, %15, %16 : vector<8x128xi32>
    %c2_i32 = arith.constant 2 : i32
    %18 = vector.broadcast %c2_i32 : i32 to vector<8x128xi32>
    %19 = arith.andi %11, %18 : vector<8x128xi32>
    %c0_i32_3 = arith.constant 0 : i32
    %20 = vector.broadcast %c0_i32_3 : i32 to vector<8x128xi32>
    %21 = arith.cmpi ne, %19, %20 : vector<8x128xi32>
    %c4_i32 = arith.constant 4 : i32
    %22 = vector.broadcast %c4_i32 : i32 to vector<8x128xi32>
    %23 = arith.andi %11, %22 : vector<8x128xi32>
    %c0_i32_4 = arith.constant 0 : i32
    %24 = vector.broadcast %c0_i32_4 : i32 to vector<8x128xi32>
    %25 = arith.cmpi ne, %23, %24 : vector<8x128xi32>
    %c8_i32 = arith.constant 8 : i32
    %26 = vector.broadcast %c8_i32 : i32 to vector<8x128xi32>
    %27 = arith.andi %11, %26 : vector<8x128xi32>
    %c0_i32_5 = arith.constant 0 : i32
    %28 = vector.broadcast %c0_i32_5 : i32 to vector<8x128xi32>
    %29 = arith.cmpi ne, %27, %28 : vector<8x128xi32>
    %30 = vector.shape_cast %2 : vector<1x128xf32> to vector<1x128xf32>
    %31 = vector.broadcast %30 : vector<1x128xf32> to vector<8x128xf32>
    %c1_i32_6 = arith.constant 1 : i32
    %32 = tpu.dynamic_rotate %31 by %c1_i32_6 dim 1 : vector<8x128xf32>, i32 -> vector<8x128xf32>
    %33 = arith.select %17, %32, %31 : vector<8x128xi1>, vector<8x128xf32>
    %c2_i32_7 = arith.constant 2 : i32
    %34 = tpu.dynamic_rotate %33 by %c2_i32_7 dim 1 : vector<8x128xf32>, i32 -> vector<8x128xf32>
    %35 = arith.select %21, %34, %33 : vector<8x128xi1>, vector<8x128xf32>
    %c4_i32_8 = arith.constant 4 : i32
    %36 = tpu.dynamic_rotate %35 by %c4_i32_8 dim 1 : vector<8x128xf32>, i32 -> vector<8x128xf32>
    %37 = arith.select %25, %36, %35 : vector<8x128xi1>, vector<8x128xf32>
    %c8_i32_9 = arith.constant 8 : i32
    %38 = tpu.dynamic_rotate %37 by %c8_i32_9 dim 1 : vector<8x128xf32>, i32 -> vector<8x128xf32>
    %39 = arith.select %29, %38, %37 : vector<8x128xi1>, vector<8x128xf32>
    %cst = arith.constant 0.000000e+00 : f32
    %40 = vector.broadcast %cst : f32 to vector<8x128xf32>
    %41 = arith.select %13, %39, %40 : vector<8x128xi1>, vector<8x128xf32>
    %42 = arith.subf %41, %31 : vector<8x128xf32>
    %cst_10 = arith.constant 2.000000e+01 : f32
    %43 = vector.broadcast %cst_10 : f32 to vector<8x128xf32>
    %44 = arith.mulf %42, %43 : vector<8x128xf32>
    %cst_11 = arith.constant 5.000000e+00 : f32
    %45 = vector.broadcast %cst_11 : f32 to vector<8x128xf32>
    %46 = arith.addf %44, %45 : vector<8x128xf32>
    %47 = arith.negf %46 : vector<8x128xf32>
    %48 = math.exp %47 : vector<8x128xf32>
    %cst_12 = arith.constant 1.000000e+00 : f32
    %49 = vector.broadcast %cst_12 : f32 to vector<8x128xf32>
    %50 = arith.addf %49, %48 : vector<8x128xf32>
    %51 = arith.divf %49, %50 : vector<8x128xf32>
    %52 = vector.shape_cast %4 : vector<1x128xf32> to vector<1x128xf32>
    %53 = vector.broadcast %52 : vector<1x128xf32> to vector<8x128xf32>
    %c1_i32_13 = arith.constant 1 : i32
    %54 = tpu.dynamic_rotate %53 by %c1_i32_13 dim 1 : vector<8x128xf32>, i32 -> vector<8x128xf32>
    %55 = arith.select %17, %54, %53 : vector<8x128xi1>, vector<8x128xf32>
    %c2_i32_14 = arith.constant 2 : i32
    %56 = tpu.dynamic_rotate %55 by %c2_i32_14 dim 1 : vector<8x128xf32>, i32 -> vector<8x128xf32>
    %57 = arith.select %21, %56, %55 : vector<8x128xi1>, vector<8x128xf32>
    %c4_i32_15 = arith.constant 4 : i32
    %58 = tpu.dynamic_rotate %57 by %c4_i32_15 dim 1 : vector<8x128xf32>, i32 -> vector<8x128xf32>
    %59 = arith.select %25, %58, %57 : vector<8x128xi1>, vector<8x128xf32>
    %c8_i32_16 = arith.constant 8 : i32
    %60 = tpu.dynamic_rotate %59 by %c8_i32_16 dim 1 : vector<8x128xf32>, i32 -> vector<8x128xf32>
    %61 = arith.select %29, %60, %59 : vector<8x128xi1>, vector<8x128xf32>
    %cst_17 = arith.constant 0.000000e+00 : f32
    %62 = vector.broadcast %cst_17 : f32 to vector<8x128xf32>
    %63 = arith.select %13, %61, %62 : vector<8x128xi1>, vector<8x128xf32>
    %64 = arith.subf %63, %53 : vector<8x128xf32>
    %cst_18 = arith.constant 2.000000e+01 : f32
    %65 = vector.broadcast %cst_18 : f32 to vector<8x128xf32>
    %66 = arith.mulf %64, %65 : vector<8x128xf32>
    %cst_19 = arith.constant 5.000000e+00 : f32
    %67 = vector.broadcast %cst_19 : f32 to vector<8x128xf32>
    %68 = arith.addf %66, %67 : vector<8x128xf32>
    %69 = arith.negf %68 : vector<8x128xf32>
    %70 = math.exp %69 : vector<8x128xf32>
    %cst_20 = arith.constant 1.000000e+00 : f32
    %71 = vector.broadcast %cst_20 : f32 to vector<8x128xf32>
    %72 = arith.addf %71, %70 : vector<8x128xf32>
    %73 = arith.divf %71, %72 : vector<8x128xf32>
    %c1_i32_21 = arith.constant 1 : i32
    %74 = vector.broadcast %c1_i32_21 : i32 to vector<8x128xi32>
    %75 = arith.cmpi sge, %9, %74 : vector<8x128xi32>
    %c1_i32_22 = arith.constant 1 : i32
    %76 = tpu.dynamic_rotate %51 by %c1_i32_22 dim 0 : vector<8x128xf32>, i32 -> vector<8x128xf32>
    %77 = arith.mulf %51, %76 : vector<8x128xf32>
    %78 = arith.select %75, %77, %51 : vector<8x128xi1>, vector<8x128xf32>
    %c1_i32_23 = arith.constant 1 : i32
    %79 = tpu.dynamic_rotate %73 by %c1_i32_23 dim 0 : vector<8x128xf32>, i32 -> vector<8x128xf32>
    %80 = arith.mulf %73, %79 : vector<8x128xf32>
    %81 = arith.select %75, %80, %73 : vector<8x128xi1>, vector<8x128xf32>
    %c2_i32_24 = arith.constant 2 : i32
    %82 = vector.broadcast %c2_i32_24 : i32 to vector<8x128xi32>
    %83 = arith.cmpi sge, %9, %82 : vector<8x128xi32>
    %c2_i32_25 = arith.constant 2 : i32
    %84 = tpu.dynamic_rotate %78 by %c2_i32_25 dim 0 : vector<8x128xf32>, i32 -> vector<8x128xf32>
    %85 = arith.mulf %78, %84 : vector<8x128xf32>
    %86 = arith.select %83, %85, %78 : vector<8x128xi1>, vector<8x128xf32>
    %c2_i32_26 = arith.constant 2 : i32
    %87 = tpu.dynamic_rotate %81 by %c2_i32_26 dim 0 : vector<8x128xf32>, i32 -> vector<8x128xf32>
    %88 = arith.mulf %81, %87 : vector<8x128xf32>
    %89 = arith.select %83, %88, %81 : vector<8x128xi1>, vector<8x128xf32>
    %c4_i32_27 = arith.constant 4 : i32
    %90 = vector.broadcast %c4_i32_27 : i32 to vector<8x128xi32>
    %91 = arith.cmpi sge, %9, %90 : vector<8x128xi32>
    %c4_i32_28 = arith.constant 4 : i32
    %92 = tpu.dynamic_rotate %86 by %c4_i32_28 dim 0 : vector<8x128xf32>, i32 -> vector<8x128xf32>
    %93 = arith.mulf %86, %92 : vector<8x128xf32>
    %94 = arith.select %91, %93, %86 : vector<8x128xi1>, vector<8x128xf32>
    %c4_i32_29 = arith.constant 4 : i32
    %95 = tpu.dynamic_rotate %89 by %c4_i32_29 dim 0 : vector<8x128xf32>, i32 -> vector<8x128xf32>
    %96 = arith.mulf %89, %95 : vector<8x128xf32>
    %97 = arith.select %91, %96, %89 : vector<8x128xi1>, vector<8x128xf32>
    %c0_30 = arith.constant 0 : index
    %c0_31 = arith.constant 0 : index
    %98 = vector.load %arg2[%c0_30, %c0_31] : memref<8x128xf32, #tpu.memory_space<vmem>>, vector<8x128xf32>
    tpu.vector_store %arg2[%c0_30, %c0_31], %94 {strides = array<i32>} : memref<8x128xf32, #tpu.memory_space<vmem>>, vector<8x128xf32>,
    %c0_32 = arith.constant 0 : index
    %c0_33 = arith.constant 0 : index
    %99 = vector.load %arg3[%c0_32, %c0_33] : memref<8x128xf32, #tpu.memory_space<vmem>>, vector<8x128xf32>
    tpu.vector_store %arg3[%c0_32, %c0_33], %97 {strides = array<i32>} : memref<8x128xf32, #tpu.memory_space<vmem>>, vector<8x128xf32>,
    return
  }
  func.func @transform_0(%arg0: i32) -> (i32, i32, i32) {
    %c0_i32 = arith.constant 0 : i32
    %c0_i32_0 = arith.constant 0 : i32
    %c0_i32_1 = arith.constant 0 : i32
    return %arg0, %c0_i32, %c0_i32_0 : i32, i32, i32
  }
  func.func @transform_1(%arg0: i32) -> (i32, i32) {
    %c0_i32 = arith.constant 0 : i32
    %c0_i32_0 = arith.constant 0 : i32
    return %arg0, %c0_i32 : i32, i32
  }
  func.func @transform_2(%arg0: i32) -> (i32, i32) {
    %c0_i32 = arith.constant 0 : i32
    %c0_i32_0 = arith.constant 0 : i32
    return %arg0, %c0_i32 : i32, i32
  }
}

</mosaic_0001>

<llo_original>
// kernel: _gate_packed.1
$region0: #{_gate_packed.1}
  #allocation0 [shape = 'u32[]', space=smem, size = 0x4, offset = 0x4, fixed_abs, tag = 'smem constant byte address 0x4 - core index']
  #allocation1 [shape = 'u32[72,128]{1,0:T(1,128)}', space=vmem, size = 0x9000, scoped, tag = 'internal scratch']
  %s0 = inlined_call_operand.vmem [shape: f32[1,8,128], index: 0, kind: input, shape index: {}]
  %s1 = inlined_call_operand.hbm [shape: f32[8,128], index: 1, kind: output, shape index: {0}]
  %s2 = inlined_call_operand.hbm [shape: f32[8,128], index: 2, kind: output, shape index: {1}]
  %3 = xla_tuple %s1, %s2
  %s4 = sld [smem:[#allocation0]]
  $region22: #{_gate_packed.1} parent=0
    _
  %s6 = ssub.s32 1, %s4
  %s7 = scalar_select 0, %s6, %s4
  $region1: #{_gate_packed.1} parent=0
    #allocation2 [shape = 'u8[4096]{0}', space=vmem, size = 0x1000, scoped, tag = 'output window, operand 0, single buffered']
    #allocation3 [shape = 's32[1]{0}', space=sflag, size = 0x4, scoped, tag = 'scoped memory for _gate_packed.1']
    #allocation4 [shape = 'u8[4096]{0}', space=vmem, size = 0x1000, scoped, tag = 'output window, operand 1, single buffered']
    #allocation5 [shape = 's32[1]{0}', space=sflag, size = 0x4, scoped, tag = 'scoped memory for _gate_packed.1']
    %8 = vsyncpa [#allocation3], 0
    %9 = vsyncpa [#allocation5], 0
    // Predicated region
    $region2: #{_gate_packed.1} parent=1 // pred_check
      _
    $region3: #{_gate_packed.1} parent=1 // pred_check_branch
      %11 = sbr.rel (0) target = $region5
    $region4: #{_gate_packed.1} parent=1 // pred_region
      _
    $region5: #{_gate_packed.1} parent=1 // pred_fallthru
      _
    %v12 = vld [vmem:[%s0] sm:$0xff]
    %v13 = vperm.slane %v12, 2
    %v14 = vlaneseq
    %v15 = vshrl.u32 %v14, 7
    %v16 = vadd.s32 %v15, 1
    %v17 = vcvt.s32.f32 %v16
    %vm18 = vcmp.ge.f32.partialorder %v13, %v17
    %v19 = vand.u32 %v16, 1
    %vm20 = vcmp.ne.s32.totalorder %v19, 0
    %v21 = vand.u32 %v16, 2
    %vm22 = vcmp.ne.s32.totalorder %v21, 0
    %v23 = vand.u32 %v16, 4
    %vm24 = vcmp.ne.s32.totalorder %v23, 0
    %v25 = vand.u32 %v16, 8
    %vm26 = vcmp.ne.s32.totalorder %v25, 0
    %v27 = vperm.slane %v12, 0
    %28 = vrot.lane.b32.xlu0 %v27, 1
    %v29 = vpop.permute.xlu0 %28
    %v30 = vsel %vm20, %v29, %v27
    %31 = vrot.lane.b32.xlu0 %v30, 2
    %v32 = vpop.permute.xlu0 %31
    %v33 = vsel %vm22, %v32, %v30
    %34 = vrot.lane.b32.xlu0 %v33, 4
    %v35 = vpop.permute.xlu0 %34
    %v36 = vsel %vm24, %v35, %v33
    %37 = vrot.lane.b32.xlu0 %v36, 8
    %v38 = vpop.permute.xlu0 %37
    %v39 = vsel %vm26, %v38, %v36
    %v40 = vsel %vm18, %v39, 0.0
    %v41 = vsub.f32 %v40, %v27
    %v42 = vmul.f32 %v41, 20.0
    %v43 = vadd.f32 %v42, 5.0
    %v44 = vxor.u32 %v43, 2147483648
    %v45 = vmul.f32 %v44, 1.442695
    %v46 = vpow.pop %v45
    %v47 = vadd.f32 %v46, 1.0
    %v48 = vrcp.pop %v47
    %v49 = vmul.f32 %v47, %v48
    %v50 = vsub.f32 1.0, %v49
    %v51 = vmul.f32 %v48, %v50
    %v52 = vadd.f32 %v48, %v51
    %vm53 = vweird.f32 %v47
    %vm54 = vweird.f32 %v48
    %vm55 = vmor %vm53, %vm54
    %v56 = vsel %vm55, %v48, %v52
    %v57 = vand.u32 2147483647, %v47
    %vm58 = vcmp.eq.f32.partialorder %v57, 8.507059e+37
    %v59 = vand.u32 %v47, 2147483648
    %v60 = vor.u32 1.1754944e-38, %v59
    %v61 = vsel %vm58, %v60, %v56
    %v62 = vmul.f32 1.0, %v61
    %v63 = vperm.slane %v12, 1
    %64 = vrot.lane.b32.xlu0 %v63, 1
    %v65 = vpop.permute.xlu0 %64
    %v66 = vsel %vm20, %v65, %v63
    %67 = vrot.lane.b32.xlu0 %v66, 2
    %v68 = vpop.permute.xlu0 %67
    %v69 = vsel %vm22, %v68, %v66
    %70 = vrot.lane.b32.xlu0 %v69, 4
    %v71 = vpop.permute.xlu0 %70
    %v72 = vsel %vm24, %v71, %v69
    %73 = vrot.lane.b32.xlu0 %v72, 8
    %v74 = vpop.permute.xlu0 %73
    %v75 = vsel %vm26, %v74, %v72
    %v76 = vsel %vm18, %v75, 0.0
    %v77 = vsub.f32 %v76, %v63
    %v78 = vmul.f32 %v77, 20.0
    %v79 = vadd.f32 %v78, 5.0
    %v80 = vxor.u32 %v79, 2147483648
    %v81 = vmul.f32 %v80, 1.442695
    %v82 = vpow.pop %v81
    %v83 = vadd.f32 %v82, 1.0
    %v84 = vrcp.pop %v83
    %v85 = vmul.f32 %v83, %v84
    %v86 = vsub.f32 1.0, %v85
    %v87 = vmul.f32 %v84, %v86
    %v88 = vadd.f32 %v84, %v87
    %vm89 = vweird.f32 %v83
    %vm90 = vweird.f32 %v84
    %vm91 = vmor %vm89, %vm90
    %v92 = vsel %vm91, %v84, %v88
    %v93 = vand.u32 2147483647, %v83
    %vm94 = vcmp.eq.f32.partialorder %v93, 8.507059e+37
    %v95 = vand.u32 %v83, 2147483648
    %v96 = vor.u32 1.1754944e-38, %v95
    %v97 = vsel %vm94, %v96, %v92
    %v98 = vmul.f32 1.0, %v97
    %vm99 = vcmp.ge.s32.totalorder %v15, 1
    %v100 = vrot.slane %v62, 7
    %v101 = vmul.f32 %v62, %v100
    %v102 = vsel %vm99, %v101, %v62
    %v103 = vrot.slane %v98, 7
    %v104 = vmul.f32 %v98, %v103
    %v105 = vsel %vm99, %v104, %v98
    %vm106 = vcmp.ge.s32.totalorder %v15, 2
    %v107 = vrot.slane %v102, 6
    %v108 = vmul.f32 %v102, %v107
    %v109 = vsel %vm106, %v108, %v102
    %v110 = vrot.slane %v105, 6
    %v111 = vmul.f32 %v105, %v110
    %v112 = vsel %vm106, %v111, %v105
    %vm113 = vcmp.ge.s32.totalorder %v15, 4
    %v114 = vrot.slane %v109, 4
    %v115 = vmul.f32 %v109, %v114
    %v116 = vsel %vm113, %v115, %v109
    %v117 = vrot.slane %v112, 4
    %v118 = vmul.f32 %v112, %v117
    %v119 = vsel %vm113, %v118, %v112
    %120 = vst [vmem:[#allocation2] sm:$0xff] %v116
    %121 = vst [vmem:[#allocation4] sm:$0xff] %v119
    // Predicated region
    $region6: #{_gate_packed.1} parent=1 // pred_check
      _
    $region7: #{_gate_packed.1} parent=1 // pred_check_branch
      %123 = sbr.rel (0) target = $region9
    $region8: #{_gate_packed.1} parent=1 // pred_region
      %125 = vsyncadd [#allocation3], 0
      %s127 = sshll.u32 [#allocation2], 4
      %s128 = int_to_ptr.vmem [resolvable:$true] %s127
      %s129 = sshll.u32 %s1, 4
      %s130 = int_to_ptr.hbm [resolvable:$true] %s129
      %132 = dma.vmem_to_hbm [thread:$0]  %s128, 128, %s130, [#allocation3]
    $region9: #{_gate_packed.1} parent=1 // pred_fallthru
      _
    // Predicated region
    $region10: #{_gate_packed.1} parent=1 // pred_check
      _
    $region11: #{_gate_packed.1} parent=1 // pred_check_branch
      %134 = sbr.rel (0) target = $region13
    $region12: #{_gate_packed.1} parent=1 // pred_region
      %136 = vsyncadd [#allocation5], 0
      %s138 = sshll.u32 [#allocation4], 4
      %s139 = int_to_ptr.vmem [resolvable:$true] %s138
      %s140 = sshll.u32 %s2, 4
      %s141 = int_to_ptr.hbm [resolvable:$true] %s140
      %143 = dma.vmem_to_hbm [thread:$0]  %s139, 128, %s141, [#allocation5]
    $region13: #{_gate_packed.1} parent=1 // pred_fallthru
      _
    // Predicated region
    $region14: #{_gate_packed.1} parent=1 // pred_check
      _
    $region15: #{_gate_packed.1} parent=1 // pred_check_branch
      %145 = sbr.rel (0) target = $region17
    $region16: #{_gate_packed.1} parent=1 // pred_region
      %147 = dma.done [#allocation3], 128
    $region17: #{_gate_packed.1} parent=1 // pred_fallthru
      _
    // Predicated region
    $region18: #{_gate_packed.1} parent=1 // pred_check
      _
    $region19: #{_gate_packed.1} parent=1 // pred_check_branch
      %149 = sbr.rel (0) target = $region21
    $region20: #{_gate_packed.1} parent=1 // pred_region
      %151 = dma.done [#allocation5], 128
    $region21: #{_gate_packed.1} parent=1 // pred_fallthru
      _
    %152 = vsyncpa [#allocation3], 1
    %153 = vsyncpa [#allocation5], 1

</llo_original>
